<compile_context>
chip_gen: v7x
topology: tpu7x:2x2x1
jax: 0.10.0
libtpu: 0.0.40
codegen_flags: <defaults>
</compile_context>

<pallas_src>
import jax
import jax.numpy as jnp
from jax.experimental import pallas as pl
from jax.experimental.pallas import tpu as pltpu

_LANE = 128          # lane width
_CHUNK = 128         # in-kernel relayout chunk along t (bounds the padded intermediate)
_MAX_BATCH_BLOCK = 8 # cap on unrolled per-kernel batch loop


def _round_up(x, m):
    return ((x + m - 1) // m) * m


def _make_kernel(f, c, b_blk, t_blk):
    n_full = t_blk // _CHUNK
    tail = t_blk - n_full * _CHUNK

    def relayout_chunk(x_ref, o_ref, b, off_in, off_out, width):
        # out[b, ci, (off_in+ti)*f + fi] = x[b, fi*c + ci, off_in+ti]
        x2d = x_ref[b, :, pl.ds(off_in, width)]        # (f*c, width)
        y = x2d.reshape(f, c, width)                   # split sublane dim
        y = jnp.transpose(y, (1, 2, 0))                # (c, width, f) -- lane-padded,
        # but bounded: width <= _CHUNK, so scratch ~ c*128*128*itemsize.
        # Collapse (width, f) -> width*f: lane-dense store (width*f multiple of 128
        # for full chunks), i.e. unmasked vst into the output block.
        o_ref[b, :, pl.ds(off_out, width * f)] = y.reshape(c, width * f)

    def kernel(x_ref, o_ref):
        # x_ref: (b_blk, f*c, t_blk)   o_ref: (b_blk, c, t_blk*f)
        for b in range(b_blk):                         # b_blk <= _MAX_BATCH_BLOCK
            if n_full > 0:
                @pl.loop(0, n_full)
                def _(i):
                    off_in = pl.multiple_of(i * _CHUNK, _CHUNK)
                    off_out = pl.multiple_of(i * (_CHUNK * f), _CHUNK)
                    relayout_chunk(x_ref, o_ref, b, off_in, off_out, _CHUNK)
            if tail > 0:
                off_in = n_full * _CHUNK
                relayout_chunk(x_ref, o_ref, b, off_in, off_in * f, tail)

    return kernel


def _plan_tiling(bs, f, c, t, itemsize, *, target_block_bytes, vmem_budget_bytes,
                 max_block_t=None):
    """Choose (batch_block, t_block, n_t, working_set_bytes)."""
    cf = f * c
    # Bounded relayout scratch: one (c, _CHUNK, f) chunk lane-padded to 128,
    # x2 for compiler temporaries.  Independent of the block size.
    inter_bytes = 2 * c * _CHUNK * _round_up(f, _LANE) * itemsize
    block_budget = max(vmem_budget_bytes - inter_bytes, vmem_budget_bytes // 2)

    one_batch_bytes = cf * t * itemsize            # one (1, cf, t) whole-t block
    if 4 * one_batch_bytes <= block_budget:
        # Whole-t blocks: contiguous HBM runs per row.  Grow the batch block to
        # amortize per-step overhead toward ~target_block_bytes, but keep >= 2
        # grid steps (v7x has 2 TensorCores) and cap the unrolled batch loop.
        t_blk, n_t, b_blk = t, 1, 1
        for d in range(1, bs + 1):
            if bs % d:
                continue
            if d > _MAX_BATCH_BLOCK:
                break
            if 4 * d * one_batch_bytes > block_budget:
                break
            if bs >= 2 and bs // d < 2:
                break
            b_blk = d
            if d * one_batch_bytes >= target_block_bytes:
                break
    else:
        # One whole-t batch row does not fit: split t into 128-multiples.
        b_blk = 1
        bytes_per_t = 4 * cf * itemsize
        if t < _LANE:
            t_blk = t
        else:
            t_blk = max(_LANE, (block_budget // bytes_per_t) // _LANE * _LANE)
            t_blk = min(t_blk, t)
        n_t = pl.cdiv(t, t_blk)

    # Debug/test override (rounded down to a legal 128-multiple).
    if max_block_t is not None and t >= _LANE and max_block_t < t_blk:
        t_blk = min(t, max(_LANE, (max_block_t // _LANE) * _LANE))
        n_t = pl.cdiv(t, t_blk)

    # v7x: avoid a 1-step grid (half the chip idle) when the problem allows it.
    if (bs // b_blk) * n_t == 1 and bs == 1 and t >= 2 * _LANE:
        t_blk = _LANE * pl.cdiv(pl.cdiv(t, 2), _LANE)
        n_t = pl.cdiv(t, t_blk)

    # Honest working set: double-buffered in + out blocks (equal sizes) + scratch.
    ws = 4 * b_blk * cf * t_blk * itemsize + inter_bytes
    return b_blk, t_blk, n_t, ws


def to2d_tfopt(x, f, c, *, max_block_t=None,
               target_block_bytes=3 * 512 * 1024,      # ~1.5 MiB per block
               vmem_budget_bytes=24 * 1024 * 1024):    # safe on v5e/v6e/v7x
    """x: (bs, f*c, t) -> (bs, c, t, f).  Pure layout transform (bit-exact)."""
    bs, cf, t = x.shape
    assert cf == f * c, f"channel dim {cf} != f*c = {f * c}"
    itemsize = x.dtype.itemsize

    b_blk, t_blk, n_t, ws = _plan_tiling(
        bs, f, c, t, itemsize,
        target_block_bytes=target_block_bytes,
        vmem_budget_bytes=vmem_budget_bytes,
        max_block_t=max_block_t)

    assert bs % b_blk == 0, (bs, b_blk)
    # (8,128) legality: lane dims are the full array dim or a 128-multiple.
    assert t_blk == t or t_blk % _LANE == 0, (t, t_blk)
    grid = (bs // b_blk, n_t)

    out_flat = pl.pallas_call(
        _make_kernel(f, c, b_blk, t_blk),
        # Flat (bs, c, t*f) output == memory layout of (bs, c, t, f).
        out_shape=jax.ShapeDtypeStruct((bs, c, t * f), x.dtype),
        grid_spec=pltpu.PrefetchScalarGridSpec(
            num_scalar_prefetch=0,
            grid=grid,
            in_specs=[
                pl.BlockSpec((b_blk, cf, t_blk), lambda bi, ti: (bi, 0, ti)),
            ],
            out_specs=pl.BlockSpec((b_blk, c, t_blk * f), lambda bi, ti: (bi, 0, ti)),
        ),
        compiler_params=pltpu.CompilerParams(
            # Both axes fully independent -> v7x can shard across its 2 TCs.
            dimension_semantics=("parallel", "parallel"),
            # Explicit scoped-VMEM from the real working set (+25% headroom).
            vmem_limit_bytes=int(max(ws * 5 // 4, 16 * 1024 * 1024)),
        ),
        cost_estimate=pl.CostEstimate(
            flops=0,
            transcendentals=0,
            bytes_accessed=2 * bs * cf * t * itemsize,
        ),
    )(x)

    # Free reshape: contiguous row-major (bs, c, t*f) -> (bs, c, t, f).
    return out_flat.reshape(bs, c, t, f)


def to2d_tfopt_ref(x, f, c):
    bs, cf, t = x.shape
    return jnp.transpose(x.reshape(bs, f, c, t), (0, 2, 3, 1))


if __name__ == "__main__":
    key = jax.random.PRNGKey(0)

    # 1) Small shapes consistent with the module: bs=2, f=4, c=8, t=16 (cf=32).
    bs, f, c, t = 2, 4, 8, 16
    x = jax.random.normal(key, (bs, f * c, t), dtype=jnp.float32)
    out = jax.block_until_ready(to2d_tfopt(x, f, c))
    ref = to2d_tfopt_ref(x, f, c)
    assert out.shape == (bs, c, t, f), out.shape
    assert out.dtype == x.dtype
    assert jnp.array_equal(out, ref), "mismatch vs reference (small shape)"

    # 2) t-tiled, chunked path with a non-divisible tail: t=320, t_blk=128.
    bs2, f2, c2, t2 = 2, 4, 8, 320
    x2 = jax.random.normal(jax.random.PRNGKey(0), (bs2, f2 * c2, t2),
                           dtype=jnp.float32)
    out2 = jax.block_until_ready(to2d_tfopt(x2, f2, c2, max_block_t=128))
    ref2 = to2d_tfopt_ref(x2, f2, c2)
    assert out2.shape == (bs2, c2, t2, f2), out2.shape
    assert jnp.array_equal(out2, ref2), "mismatch vs reference (tiled, ragged t)"

    # 3) Batch-blocked whole-t path (b_blk=2) with the in-kernel chunk loop.
    bs3, f3, c3, t3 = 4, 4, 8, 256
    x3 = jax.random.normal(jax.random.PRNGKey(1), (bs3, f3 * c3, t3),
                           dtype=jnp.float32)
    out3 = jax.block_until_ready(to2d_tfopt(x3, f3, c3))
    ref3 = to2d_tfopt_ref(x3, f3, c3)
    assert out3.shape == (bs3, c3, t3, f3), out3.shape
    assert jnp.array_equal(out3, ref3), "mismatch vs reference (batch-blocked)"

    print("KERNEL_OK")
</pallas_src>

<mosaic_0001>
module attributes {stable_mosaic.version = 11 : i64} {
  func.func @kernel(%arg0: i32, %arg1: i32, %arg2: memref<1x32x16xf32, #tpu.memory_space<vmem>>, %arg3: memref<1x8x64xf32, #tpu.memory_space<vmem>>) attributes {dimension_semantics = [#tpu.dimension_semantics<parallel>, #tpu.dimension_semantics<parallel>], iteration_bounds = array<i64: 2, 1>, scalar_prefetch = 0 : i64, scratch_operands = 0 : i64, tpu.core_type = #tpu.core_type<tc>, window_params = [{transform_indices = @transform_0, window_bounds = array<i64: 1, 32, 16>}, {transform_indices = @transform_1, window_bounds = array<i64: 1, 8, 64>}]} {
    %c0 = arith.constant 0 : index
    %c0_0 = arith.constant 0 : index
    %c0_1 = arith.constant 0 : index
    %0 = vector.load %arg2[%c0, %c0_0, %c0_1] : memref<1x32x16xf32, #tpu.memory_space<vmem>>, vector<1x32x16xf32>
    %1 = vector.shape_cast %0 : vector<1x32x16xf32> to vector<32x16xf32>
    %2 = vector.shape_cast %1 : vector<32x16xf32> to vector<4x8x16xf32>
    %3 = tpu.transpose %2, [1, 2, 0] : vector<4x8x16xf32> -> vector<8x16x4xf32>
    %4 = vector.shape_cast %3 : vector<8x16x4xf32> to vector<8x64xf32>
    %c0_2 = arith.constant 0 : index
    %c0_3 = arith.constant 0 : index
    %c0_4 = arith.constant 0 : index
    %5 = vector.load %arg3[%c0_2, %c0_3, %c0_4] : memref<1x8x64xf32, #tpu.memory_space<vmem>>, vector<1x8x64xf32>
    %6 = vector.shape_cast %5 : vector<1x8x64xf32> to vector<8x64xf32>
    %7 = vector.shape_cast %4 : vector<8x64xf32> to vector<1x8x64xf32>
    tpu.vector_store %arg3[%c0_2, %c0_3, %c0_4], %7 {strides = array<i32>} : memref<1x8x64xf32, #tpu.memory_space<vmem>>, vector<1x8x64xf32>,
    return
  }
  func.func @transform_0(%arg0: i32, %arg1: i32) -> (i32, i32, i32) {
    %c0_i32 = arith.constant 0 : i32
    %c0_i32_0 = arith.constant 0 : i32
    return %arg0, %c0_i32, %arg1 : i32, i32, i32
  }
  func.func @transform_1(%arg0: i32, %arg1: i32) -> (i32, i32, i32) {
    %c0_i32 = arith.constant 0 : i32
    %c0_i32_0 = arith.constant 0 : i32
    return %arg0, %c0_i32, %arg1 : i32, i32, i32
  }
}

</mosaic_0001>

<llo_original>
// kernel: tpu_custom_call.1
$region0: #{tpu_custom_call.1}
  #allocation0 [shape = 'u32[]', space=smem, size = 0x4, offset = 0x4, fixed_abs, tag = 'smem constant byte address 0x4 - core index']
  #allocation1 [shape = 'u32[144,128]{1,0:T(1,128)}', space=vmem, size = 0x12000, scoped, tag = 'internal scratch']
  %s0 = inlined_call_operand.vmem [shape: f32[2,32,16], index: 0, kind: input, shape index: {}]
  %s1 = inlined_call_operand.hbm [shape: f32[2,8,64], index: 1, kind: output, shape index: {}]
  %s2 = sld [smem:[#allocation0]]
  $region37: #{tpu_custom_call.1} parent=0
    _
  %s4 = ssub.s32 1, %s2
  %s5 = scalar_select 0, %s4, %s2
  $region1: #{tpu_custom_call.1} parent=0
    #allocation2 [shape = 'u8[8192]{0}', space=vmem, size = 0x2000, scoped, tag = 'output window, operand 0']
    #allocation3 [shape = 's32[2]{0}', space=sflag, size = 0x8, scoped, tag = 'scoped memory for tpu_custom_call.1']
    %6 = vsyncpa [#allocation3], 0
    %s7 = scalar_lea.sflag [#allocation3], 1
    %8 = vsyncpa %s7, 0
    loop: start=0, step=1, limit=4
    $region2: #{tpu_custom_call.1} parent=1 // loop_pre_header
      _
    $region3: #{tpu_custom_call.1} parent=1 // loop_header
      %s10 = sphi 0, %s14
      %p11 = scmp.ge.s32.totalorder %s10, 4
      %s17 = sphi 0, %s29
      %s18 = sphi 0, %s25
      %s19 = sphi 0, %s17
      %s20 = sphi 0, %s18
      %s21 = sphi 0, %s19
      %s22 = sphi 0, %s20
      %s34 = sphi 0, %s36
      %s37 = sphi 0, %s34
      %s38 = sphi 0, %s37
      %s54 = sphi 0, %s38
      %s62 = sphi 0, %s64
      %s65 = sphi 0, %s62
      %s66 = sphi 0, %s65
      %s82 = sphi 0, %s66
    $region4: #{tpu_custom_call.1} parent=1 // loop_header_branch
      %13 = sbr.rel (%p11) target = $region8
    $region5: #{tpu_custom_call.1} parent=1 // loop_body
      %s15 = ssub.s32 %s10, 1
      %s16 = ssub.s32 %s10, 2
      %s23 = sadd.s32 1, %s18
      %p24 = scmp.ge.s32.totalorder %s23, 1
      %s25 = scalar_select %p24, 0, %s23
      %s26 = sadd.s32 1, %s17
      %s27 = scalar_select %p24, %s26, %s17
      %p28 = scmp.ge.s32.totalorder %s27, 2
      %s29 = scalar_select %p28, 0, %s27
      %s30 = ssub.s32 %s17, %s29
      %s31 = ssub.s32 %s18, %s25
      %s32 = sor.u32 %s30, %s31
      %p33 = scmp.eq.s32.totalorder %s32, 0
      %s35 = sadd.s32 %s34, 1
      %s36 = scalar_select %p33, %s34, %s35
      %p39 = pneg %p33
      %p40 = scmp.eq.s32.totalorder %s10, 1
      %p41 = por %p39, %p40
      %p42 = scmp.ne.s32.totalorder %s34, %s37
      %p43 = scmp.eq.s32.totalorder %s10, 0
      %p44 = por %p42, %p43
      %p45 = scmp.ne.s32.totalorder %s34, %s37
      %p46 = scmp.eq.s32.totalorder %s15, 1
      %p47 = por %p45, %p46
      %p48 = scmp.ne.s32.totalorder %s37, %s38
      %p49 = scmp.eq.s32.totalorder %s15, 0
      %p50 = por %p48, %p49
      %p51 = scmp.ne.s32.totalorder %s37, %s38
      %p52 = scmp.eq.s32.totalorder %s16, 1
      %p53 = por %p51, %p52
      %p55 = scmp.ne.s32.totalorder %s38, %s54
      %p56 = scmp.eq.s32.totalorder %s16, 0
      %p57 = por %p55, %p56
      %s58 = ssub.s32 %s17, %s29
      %s59 = ssub.s32 %s18, %s25
      %s60 = sor.u32 %s58, %s59
      %p61 = scmp.eq.s32.totalorder %s60, 0
      %s63 = sadd.s32 %s62, 1
      %s64 = scalar_select %p61, %s62, %s63
      %p67 = pneg %p61
      %p68 = scmp.eq.s32.totalorder %s10, 1
      %p69 = por %p67, %p68
      %p70 = scmp.ne.s32.totalorder %s62, %s65
      %p71 = scmp.eq.s32.totalorder %s10, 0
      %p72 = por %p70, %p71
      %p73 = scmp.ne.s32.totalorder %s62, %s65
      %p74 = scmp.eq.s32.totalorder %s15, 1
      %p75 = por %p73, %p74
      %p76 = scmp.ne.s32.totalorder %s65, %s66
      %p77 = scmp.eq.s32.totalorder %s15, 0
      %p78 = por %p76, %p77
      %p79 = scmp.ne.s32.totalorder %s65, %s66
      %p80 = scmp.eq.s32.totalorder %s16, 1
      %p81 = por %p79, %p80
      %p83 = scmp.ne.s32.totalorder %s66, %s82
      %p84 = scmp.eq.s32.totalorder %s16, 0
      %p85 = por %p83, %p84
      %p86 = scmp.le.s32.totalorder 1, %s10
      %p87 = scmp.lt.s32.totalorder %s10, 3
      %p88 = pnand %p86, %p87
      %p89 = pneg %p88
      // Predicated region
      $region9: #{tpu_custom_call.1} parent=5 // pred_check
        _
      $region10: #{tpu_custom_call.1} parent=5 // pred_check_branch
        %91 = sbr.rel (%p88) target = $region12
      $region11: #{tpu_custom_call.1} parent=5 // pred_region
        %s92 = ssub.s32 %s10, 1
      $region12: #{tpu_custom_call.1} parent=5 // pred_fallthru
        _
      %p93 = scmp.lt.s32.totalorder %s10, 2
      // Predicated region
      $region13: #{tpu_custom_call.1} parent=5 // pred_check
        %p94 = pneg %p93
      $region14: #{tpu_custom_call.1} parent=5 // pred_check_branch
        %96 = sbr.rel (%p94) target = $region16
      $region15: #{tpu_custom_call.1} parent=5 // pred_region
        // Predicated region
        $region17: #{tpu_custom_call.1} parent=15 // pred_check
          %p97 = pneg %p44
        $region18: #{tpu_custom_call.1} parent=15 // pred_check_branch
          %99 = sbr.rel (%p97) target = $region20
        $region19: #{tpu_custom_call.1} parent=15 // pred_region
          %p100 = scmp.lt.s32.totalorder %s17, 1
          %s101 = scalar_select %p100, %s17, 1
          %p102 = scmp.lt.s32.totalorder %s18, 0
          %s103 = scalar_select %p102, %s18, 0
          %s104 = smul.addr %s101, 4
          %s105 = sadd.s32 %s103, %s104
          %s106 = smul.addr %s105, 8
          %s107 = scalar_lea.vmem %s0, %s106
        $region20: #{tpu_custom_call.1} parent=15 // pred_fallthru
          _
      $region16: #{tpu_custom_call.1} parent=5 // pred_fallthru
        _
      %p108 = scmp.le.s32.totalorder 1, %s10
      %p109 = scmp.lt.s32.totalorder %s10, 3
      %p110 = pnand %p108, %p109
      %p111 = pneg %p110
      // Predicated region
      $region21: #{tpu_custom_call.1} parent=5 // pred_check
        _
      $region22: #{tpu_custom_call.1} parent=5 // pred_check_branch
        %113 = sbr.rel (%p110) target = $region24
      $region23: #{tpu_custom_call.1} parent=5 // pred_region
        %s114 = ssub.s32 %s10, 1
        %p115 = scmp.lt.s32.totalorder %s19, 1
        %s116 = scalar_select %p115, %s19, 1
        %p117 = scmp.lt.s32.totalorder %s20, 0
        %s118 = scalar_select %p117, %s20, 0
        %s119 = smul.addr %s116, 4
        %s120 = sadd.s32 %s118, %s119
        %s121 = smul.addr %s120, 8
        %s122 = scalar_lea.vmem %s0, %s121
        %p123 = pneg %p50
        %p124 = pneg %p47
        %p125 = pneg %p78
        %p126 = pneg %p75
        %s127 = sand.u32 %s65, 1
        %s128 = scalar_lea.sflag [#allocation3], %s127
        %s129 = sand.u32 %s65, 1
        %s130 = smul.addr %s129, 8
        %s131 = scalar_lea.vmem [#allocation2], %s130
        %p132 = scmp.lt.s32.totalorder %s19, 1
        %s133 = scalar_select %p132, %s19, 1
        %p134 = scmp.lt.s32.totalorder %s20, 0
        %s135 = scalar_select %p134, %s20, 0
        %s136 = smul.addr %s133, 4
        %s137 = sadd.s32 %s135, %s136
        %s138 = smul.addr %s137, 8
        %s139 = scalar_lea.vmem %s0, %s138
        %v140 = vld [vmem:[%s139] sm:$0xff]
        %v141 = vld [vmem:[%s139 + $0x8] sm:$0xff]
        %v142 = vld [vmem:[%s139 + $0x10] sm:$0xff]
        %v143 = vld [vmem:[%s139 + $0x18] sm:$0xff]
        %144 = vxpose.xlu0.b32.start [1/16] %v140, 128
        %145 = vxpose.xlu0.b32.cont [2/16] 0.0, 128
        %146 = vxpose.xlu0.b32.cont [3/16] 0.0, 128
        %147 = vxpose.xlu0.b32.cont [4/16] 0.0, 128
        %148 = vxpose.xlu0.b32.cont [5/16] 0.0, 128
        %149 = vxpose.xlu0.b32.cont [6/16] 0.0, 128
        %150 = vxpose.xlu0.b32.cont [7/16] 0.0, 128
        %151 = vxpose.xlu0.b32.cont [8/16] 0.0, 128
        %152 = vxpose.xlu0.b32.cont [9/16] 0.0, 128
        %153 = vxpose.xlu0.b32.cont [10/16] 0.0, 128
        %154 = vxpose.xlu0.b32.cont [11/16] 0.0, 128
        %155 = vxpose.xlu0.b32.cont [12/16] 0.0, 128
        %156 = vxpose.xlu0.b32.cont [13/16] 0.0, 128
        %157 = vxpose.xlu0.b32.cont [14/16] 0.0, 128
        %158 = vxpose.xlu0.b32.cont [15/16] 0.0, 128
        %159 = vxpose.xlu0.b32.end [16/16] 0.0, 128
        %v160 = vpop.trf.xlu0
        %v161 = vpop.trf.xlu0
        %v162 = vpop.trf.xlu0
        %v163 = vpop.trf.xlu0
        %v164 = vpop.trf.xlu0
        %v165 = vpop.trf.xlu0
        %v166 = vpop.trf.xlu0
        %v167 = vpop.trf.xlu0
        %v168 = vpop.trf.xlu0
        %v169 = vpop.trf.xlu0
        %v170 = vpop.trf.xlu0
        %v171 = vpop.trf.xlu0
        %v172 = vpop.trf.xlu0
        %v173 = vpop.trf.xlu0
        %v174 = vpop.trf.xlu0
        %v175 = vpop.trf.xlu0
        %176 = vxpose.xlu0.b32.start [1/16] %v141, 128
        %177 = vxpose.xlu0.b32.cont [2/16] 0.0, 128
        %178 = vxpose.xlu0.b32.cont [3/16] 0.0, 128
        %179 = vxpose.xlu0.b32.cont [4/16] 0.0, 128
        %180 = vxpose.xlu0.b32.cont [5/16] 0.0, 128
        %181 = vxpose.xlu0.b32.cont [6/16] 0.0, 128
        %182 = vxpose.xlu0.b32.cont [7/16] 0.0, 128
        %183 = vxpose.xlu0.b32.cont [8/16] 0.0, 128
        %184 = vxpose.xlu0.b32.cont [9/16] 0.0, 128
        %185 = vxpose.xlu0.b32.cont [10/16] 0.0, 128
        %186 = vxpose.xlu0.b32.cont [11/16] 0.0, 128
        %187 = vxpose.xlu0.b32.cont [12/16] 0.0, 128
        %188 = vxpose.xlu0.b32.cont [13/16] 0.0, 128
        %189 = vxpose.xlu0.b32.cont [14/16] 0.0, 128
        %190 = vxpose.xlu0.b32.cont [15/16] 0.0, 128
        %191 = vxpose.xlu0.b32.end [16/16] 0.0, 128
        %v192 = vpop.trf.xlu0
        %v193 = vpop.trf.xlu0
        %v194 = vpop.trf.xlu0
        %v195 = vpop.trf.xlu0
        %v196 = vpop.trf.xlu0
        %v197 = vpop.trf.xlu0
        %v198 = vpop.trf.xlu0
        %v199 = vpop.trf.xlu0
        %v200 = vpop.trf.xlu0
        %v201 = vpop.trf.xlu0
        %v202 = vpop.trf.xlu0
        %v203 = vpop.trf.xlu0
        %v204 = vpop.trf.xlu0
        %v205 = vpop.trf.xlu0
        %v206 = vpop.trf.xlu0
        %v207 = vpop.trf.xlu0
        %208 = vxpose.xlu0.b32.start [1/16] %v142, 128
        %209 = vxpose.xlu0.b32.cont [2/16] 0.0, 128
        %210 = vxpose.xlu0.b32.cont [3/16] 0.0, 128
        %211 = vxpose.xlu0.b32.cont [4/16] 0.0, 128
        %212 = vxpose.xlu0.b32.cont [5/16] 0.0, 128
        %213 = vxpose.xlu0.b32.cont [6/16] 0.0, 128
        %214 = vxpose.xlu0.b32.cont [7/16] 0.0, 128
        %215 = vxpose.xlu0.b32.cont [8/16] 0.0, 128
        %216 = vxpose.xlu0.b32.cont [9/16] 0.0, 128
        %217 = vxpose.xlu0.b32.cont [10/16] 0.0, 128
        %218 = vxpose.xlu0.b32.cont [11/16] 0.0, 128
        %219 = vxpose.xlu0.b32.cont [12/16] 0.0, 128
        %220 = vxpose.xlu0.b32.cont [13/16] 0.0, 128
        %221 = vxpose.xlu0.b32.cont [14/16] 0.0, 128
        %222 = vxpose.xlu0.b32.cont [15/16] 0.0, 128
        %223 = vxpose.xlu0.b32.end [16/16] 0.0, 128
        %v224 = vpop.trf.xlu0
        %v225 = vpop.trf.xlu0
        %v226 = vpop.trf.xlu0
        %v227 = vpop.trf.xlu0
        %v228 = vpop.trf.xlu0
        %v229 = vpop.trf.xlu0
        %v230 = vpop.trf.xlu0
        %v231 = vpop.trf.xlu0
        %v232 = vpop.trf.xlu0
        %v233 = vpop.trf.xlu0
        %v234 = vpop.trf.xlu0
        %v235 = vpop.trf.xlu0
        %v236 = vpop.trf.xlu0
        %v237 = vpop.trf.xlu0
        %v238 = vpop.trf.xlu0
        %v239 = vpop.trf.xlu0
        %240 = vxpose.xlu0.b32.start [1/16] %v143, 128
        %241 = vxpose.xlu0.b32.cont [2/16] 0.0, 128
        %242 = vxpose.xlu0.b32.cont [3/16] 0.0, 128
        %243 = vxpose.xlu0.b32.cont [4/16] 0.0, 128
        %244 = vxpose.xlu0.b32.cont [5/16] 0.0, 128
        %245 = vxpose.xlu0.b32.cont [6/16] 0.0, 128
        %246 = vxpose.xlu0.b32.cont [7/16] 0.0, 128
        %247 = vxpose.xlu0.b32.cont [8/16] 0.0, 128
        %248 = vxpose.xlu0.b32.cont [9/16] 0.0, 128
        %249 = vxpose.xlu0.b32.cont [10/16] 0.0, 128
        %250 = vxpose.xlu0.b32.cont [11/16] 0.0, 128
        %251 = vxpose.xlu0.b32.cont [12/16] 0.0, 128
        %252 = vxpose.xlu0.b32.cont [13/16] 0.0, 128
        %253 = vxpose.xlu0.b32.cont [14/16] 0.0, 128
        %254 = vxpose.xlu0.b32.cont [15/16] 0.0, 128
        %255 = vxpose.xlu0.b32.end [16/16] 0.0, 128
        %v256 = vpop.trf.xlu0
        %v257 = vpop.trf.xlu0
        %v258 = vpop.trf.xlu0
        %v259 = vpop.trf.xlu0
        %v260 = vpop.trf.xlu0
        %v261 = vpop.trf.xlu0
        %v262 = vpop.trf.xlu0
        %v263 = vpop.trf.xlu0
        %v264 = vpop.trf.xlu0
        %v265 = vpop.trf.xlu0
        %v266 = vpop.trf.xlu0
        %v267 = vpop.trf.xlu0
        %v268 = vpop.trf.xlu0
        %v269 = vpop.trf.xlu0
        %v270 = vpop.trf.xlu0
        %v271 = vpop.trf.xlu0
        %v272 = vcombine.low %v160, %v224
        %v273 = vcombine.high %v160, %v224
        %v275 = vunpack.c.l.s4 1983009808
        %v276 = vunpack.c.0.s8 %v275
        %v277 = vlaneseq
        %v278 = vshrl.u32 %v277, 7
        %v279 = vsub.s32 %v276, %v278
        %v280 = vrot.slane %v272, %v279
        %v282 = vunpack.c.l.s4 1983009808
        %v283 = vunpack.c.0.s8 %v282
        %v284 = vlaneseq
        %v285 = vshrl.u32 %v284, 7
        %v286 = vsub.s32 %v283, %v285
        %v287 = vrot.slane %v273, %v286
        %v288 = vcombine.low %v192, %v256
        %v289 = vcombine.high %v192, %v256
        %v291 = vunpack.c.l.s4 1983009808
        %v292 = vunpack.c.0.s8 %v291
        %v293 = vlaneseq
        %v294 = vshrl.u32 %v293, 7
        %v295 = vsub.s32 %v292, %v294
        %v296 = vrot.slane %v288, %v295
        %v298 = vunpack.c.l.s4 1983009808
        %v299 = vunpack.c.0.s8 %v298
        %v300 = vlaneseq
        %v301 = vshrl.u32 %v300, 7
        %v302 = vsub.s32 %v299, %v301
        %v303 = vrot.slane %v289, %v302
        %v304 = vcombine.low %v280, %v296
        %v305 = vcombine.high %v280, %v296
        %v307 = vunpack.c.l.s4 1934713408
        %v308 = vunpack.c.0.s8 %v307
        %v309 = vlaneseq
        %v310 = vshrl.u32 %v309, 7
        %v311 = vsub.s32 %v308, %v310
        %v312 = vrot.slane %v304, %v311
        %v314 = vunpack.c.l.s4 1934713408
        %v315 = vunpack.c.0.s8 %v314
        %v316 = vlaneseq
        %v317 = vshrl.u32 %v316, 7
        %v318 = vsub.s32 %v315, %v317
        %v319 = vrot.slane %v305, %v318
        %v320 = vcombine.low %v287, %v303
        %v321 = vcombine.high %v287, %v303
        %v323 = vunpack.c.l.s4 1934713408
        %v324 = vunpack.c.0.s8 %v323
        %v325 = vlaneseq
        %v326 = vshrl.u32 %v325, 7
        %v327 = vsub.s32 %v324, %v326
        %v328 = vrot.slane %v320, %v327
        %v330 = vunpack.c.l.s4 1934713408
        %v331 = vunpack.c.0.s8 %v330
        %v332 = vlaneseq
        %v333 = vshrl.u32 %v332, 7
        %v334 = vsub.s32 %v331, %v333
        %v335 = vrot.slane %v321, %v334
        %v336 = vcombine.high %v312, 0.0
        %v337 = vcombine.high %v319, 0.0
        %v338 = vcombine.high %v328, 0.0
        %v339 = vcombine.high %v335, 0.0
        %v340 = vcombine.low %v161, %v225
        %v341 = vcombine.high %v161, %v225
        %v343 = vunpack.c.l.s4 1983009808
        %v344 = vunpack.c.0.s8 %v343
        %v345 = vlaneseq
        %v346 = vshrl.u32 %v345, 7
        %v347 = vsub.s32 %v344, %v346
        %v348 = vrot.slane %v340, %v347
        %v350 = vunpack.c.l.s4 1983009808
        %v351 = vunpack.c.0.s8 %v350
        %v352 = vlaneseq
        %v353 = vshrl.u32 %v352, 7
        %v354 = vsub.s32 %v351, %v353
        %v355 = vrot.slane %v341, %v354
        %v356 = vcombine.low %v193, %v257
        %v357 = vcombine.high %v193, %v257
        %v359 = vunpack.c.l.s4 1983009808
        %v360 = vunpack.c.0.s8 %v359
        %v361 = vlaneseq
        %v362 = vshrl.u32 %v361, 7
        %v363 = vsub.s32 %v360, %v362
        %v364 = vrot.slane %v356, %v363
        %v366 = vunpack.c.l.s4 1983009808
        %v367 = vunpack.c.0.s8 %v366
        %v368 = vlaneseq
        %v369 = vshrl.u32 %v368, 7
        %v370 = vsub.s32 %v367, %v369
        %v371 = vrot.slane %v357, %v370
        %v372 = vcombine.low %v348, %v364
        %v373 = vcombine.high %v348, %v364
        %v375 = vunpack.c.l.s4 1934713408
        %v376 = vunpack.c.0.s8 %v375
        %v377 = vlaneseq
        %v378 = vshrl.u32 %v377, 7
        %v379 = vsub.s32 %v376, %v378
        %v380 = vrot.slane %v372, %v379
        %v382 = vunpack.c.l.s4 1934713408
        %v383 = vunpack.c.0.s8 %v382
        %v384 = vlaneseq
        %v385 = vshrl.u32 %v384, 7
        %v386 = vsub.s32 %v383, %v385
        %v387 = vrot.slane %v373, %v386
        %v388 = vcombine.low %v355, %v371
        %v389 = vcombine.high %v355, %v371
        %v391 = vunpack.c.l.s4 1934713408
        %v392 = vunpack.c.0.s8 %v391
        %v393 = vlaneseq
        %v394 = vshrl.u32 %v393, 7
        %v395 = vsub.s32 %v392, %v394
        %v396 = vrot.slane %v388, %v395
        %v398 = vunpack.c.l.s4 1934713408
        %v399 = vunpack.c.0.s8 %v398
        %v400 = vlaneseq
        %v401 = vshrl.u32 %v400, 7
        %v402 = vsub.s32 %v399, %v401
        %v403 = vrot.slane %v389, %v402
        %v404 = vcombine.high %v380, 0.0
        %v405 = vcombine.high %v387, 0.0
        %v406 = vcombine.high %v396, 0.0
        %v407 = vcombine.high %v403, 0.0
        %408 = vxpose.xlu0.b32.start [1/16] %v312, 128
        %409 = vxpose.xlu0.b32.cont [2/16] 0.0, 128
        %410 = vxpose.xlu0.b32.cont [3/16] 0.0, 128
        %411 = vxpose.xlu0.b32.cont [4/16] 0.0, 128
        %412 = vxpose.xlu0.b32.cont [5/16] 0.0, 128
        %413 = vxpose.xlu0.b32.cont [6/16] 0.0, 128
        %414 = vxpose.xlu0.b32.cont [7/16] 0.0, 128
        %415 = vxpose.xlu0.b32.cont [8/16] 0.0, 128
        %416 = vxpose.xlu0.b32.cont [9/16] 0.0, 128
        %417 = vxpose.xlu0.b32.cont [10/16] 0.0, 128
        %418 = vxpose.xlu0.b32.cont [11/16] 0.0, 128
        %419 = vxpose.xlu0.b32.cont [12/16] 0.0, 128
        %420 = vxpose.xlu0.b32.cont [13/16] 0.0, 128
        %421 = vxpose.xlu0.b32.cont [14/16] 0.0, 128
        %422 = vxpose.xlu0.b32.cont [15/16] 0.0, 128
        %423 = vxpose.xlu0.b32.end [16/16] 0.0, 128
        %v424 = vpop.trf.xlu0
        %v425 = vpop.trf.xlu0
        %v426 = vpop.trf.xlu0
        %v427 = vpop.trf.xlu0
        %v428 = vpop.trf.xlu0
        %v429 = vpop.trf.xlu0
        %v430 = vpop.trf.xlu0
        %v431 = vpop.trf.xlu0
        %v432 = vpop.trf.xlu0
        %v433 = vpop.trf.xlu0
        %v434 = vpop.trf.xlu0
        %v435 = vpop.trf.xlu0
        %v436 = vpop.trf.xlu0
        %v437 = vpop.trf.xlu0
        %v438 = vpop.trf.xlu0
        %v439 = vpop.trf.xlu0
        %440 = vxpose.xlu0.b32.start [1/16] %v336, 128
        %441 = vxpose.xlu0.b32.cont [2/16] 0.0, 128
        %442 = vxpose.xlu0.b32.cont [3/16] 0.0, 128
        %443 = vxpose.xlu0.b32.cont [4/16] 0.0, 128
        %444 = vxpose.xlu0.b32.cont [5/16] 0.0, 128
        %445 = vxpose.xlu0.b32.cont [6/16] 0.0, 128
        %446 = vxpose.xlu0.b32.cont [7/16] 0.0, 128
        %447 = vxpose.xlu0.b32.cont [8/16] 0.0, 128
        %448 = vxpose.xlu0.b32.cont [9/16] 0.0, 128
        %449 = vxpose.xlu0.b32.cont [10/16] 0.0, 128
        %450 = vxpose.xlu0.b32.cont [11/16] 0.0, 128
        %451 = vxpose.xlu0.b32.cont [12/16] 0.0, 128
        %452 = vxpose.xlu0.b32.cont [13/16] 0.0, 128
        %453 = vxpose.xlu0.b32.cont [14/16] 0.0, 128
        %454 = vxpose.xlu0.b32.cont [15/16] 0.0, 128
        %455 = vxpose.xlu0.b32.end [16/16] 0.0, 128
        %v456 = vpop.trf.xlu0
        %v457 = vpop.trf.xlu0
        %v458 = vpop.trf.xlu0
        %v459 = vpop.trf.xlu0
        %v460 = vpop.trf.xlu0
        %v461 = vpop.trf.xlu0
        %v462 = vpop.trf.xlu0
        %v463 = vpop.trf.xlu0
        %v464 = vpop.trf.xlu0
        %v465 = vpop.trf.xlu0
        %v466 = vpop.trf.xlu0
        %v467 = vpop.trf.xlu0
        %v468 = vpop.trf.xlu0
        %v469 = vpop.trf.xlu0
        %v470 = vpop.trf.xlu0
        %v471 = vpop.trf.xlu0
        %472 = vxpose.xlu0.b32.start [1/16] %v319, 128
        %473 = vxpose.xlu0.b32.cont [2/16] 0.0, 128
        %474 = vxpose.xlu0.b32.cont [3/16] 0.0, 128
        %475 = vxpose.xlu0.b32.cont [4/16] 0.0, 128
        %476 = vxpose.xlu0.b32.cont [5/16] 0.0, 128
        %477 = vxpose.xlu0.b32.cont [6/16] 0.0, 128
        %478 = vxpose.xlu0.b32.cont [7/16] 0.0, 128
        %479 = vxpose.xlu0.b32.cont [8/16] 0.0, 128
        %480 = vxpose.xlu0.b32.cont [9/16] 0.0, 128
        %481 = vxpose.xlu0.b32.cont [10/16] 0.0, 128
        %482 = vxpose.xlu0.b32.cont [11/16] 0.0, 128
        %483 = vxpose.xlu0.b32.cont [12/16] 0.0, 128
        %484 = vxpose.xlu0.b32.cont [13/16] 0.0, 128
        %485 = vxpose.xlu0.b32.cont [14/16] 0.0, 128
        %486 = vxpose.xlu0.b32.cont [15/16] 0.0, 128
        %487 = vxpose.xlu0.b32.end [16/16] 0.0, 128
        %v488 = vpop.trf.xlu0
        %v489 = vpop.trf.xlu0
        %v490 = vpop.trf.xlu0
        %v491 = vpop.trf.xlu0
        %v492 = vpop.trf.xlu0
        %v493 = vpop.trf.xlu0
        %v494 = vpop.trf.xlu0
        %v495 = vpop.trf.xlu0
        %v496 = vpop.trf.xlu0
        %v497 = vpop.trf.xlu0
        %v498 = vpop.trf.xlu0
        %v499 = vpop.trf.xlu0
        %v500 = vpop.trf.xlu0
        %v501 = vpop.trf.xlu0
        %v502 = vpop.trf.xlu0
        %v503 = vpop.trf.xlu0
        %504 = vxpose.xlu0.b32.start [1/16] %v337, 128
        %505 = vxpose.xlu0.b32.cont [2/16] 0.0, 128
        %506 = vxpose.xlu0.b32.cont [3/16] 0.0, 128
        %507 = vxpose.xlu0.b32.cont [4/16] 0.0, 128
        %508 = vxpose.xlu0.b32.cont [5/16] 0.0, 128
        %509 = vxpose.xlu0.b32.cont [6/16] 0.0, 128
        %510 = vxpose.xlu0.b32.cont [7/16] 0.0, 128
        %511 = vxpose.xlu0.b32.cont [8/16] 0.0, 128
        %512 = vxpose.xlu0.b32.cont [9/16] 0.0, 128
        %513 = vxpose.xlu0.b32.cont [10/16] 0.0, 128
        %514 = vxpose.xlu0.b32.cont [11/16] 0.0, 128
        %515 = vxpose.xlu0.b32.cont [12/16] 0.0, 128
        %516 = vxpose.xlu0.b32.cont [13/16] 0.0, 128
        %517 = vxpose.xlu0.b32.cont [14/16] 0.0, 128
        %518 = vxpose.xlu0.b32.cont [15/16] 0.0, 128
        %519 = vxpose.xlu0.b32.end [16/16] 0.0, 128
        %v520 = vpop.trf.xlu0
        %v521 = vpop.trf.xlu0
        %v522 = vpop.trf.xlu0
        %v523 = vpop.trf.xlu0
        %v524 = vpop.trf.xlu0
        %v525 = vpop.trf.xlu0
        %v526 = vpop.trf.xlu0
        %v527 = vpop.trf.xlu0
        %v528 = vpop.trf.xlu0
        %v529 = vpop.trf.xlu0
        %v530 = vpop.trf.xlu0
        %v531 = vpop.trf.xlu0
        %v532 = vpop.trf.xlu0
        %v533 = vpop.trf.xlu0
        %v534 = vpop.trf.xlu0
        %v535 = vpop.trf.xlu0
        %536 = vxpose.xlu0.b32.start [1/16] %v328, 128
        %537 = vxpose.xlu0.b32.cont [2/16] 0.0, 128
        %538 = vxpose.xlu0.b32.cont [3/16] 0.0, 128
        %539 = vxpose.xlu0.b32.cont [4/16] 0.0, 128
        %540 = vxpose.xlu0.b32.cont [5/16] 0.0, 128
        %541 = vxpose.xlu0.b32.cont [6/16] 0.0, 128
        %542 = vxpose.xlu0.b32.cont [7/16] 0.0, 128
        %543 = vxpose.xlu0.b32.cont [8/16] 0.0, 128
        %544 = vxpose.xlu0.b32.cont [9/16] 0.0, 128
        %545 = vxpose.xlu0.b32.cont [10/16] 0.0, 128
        %546 = vxpose.xlu0.b32.cont [11/16] 0.0, 128
        %547 = vxpose.xlu0.b32.cont [12/16] 0.0, 128
        %548 = vxpose.xlu0.b32.cont [13/16] 0.0, 128
        %549 = vxpose.xlu0.b32.cont [14/16] 0.0, 128
        %550 = vxpose.xlu0.b32.cont [15/16] 0.0, 128
        %551 = vxpose.xlu0.b32.end [16/16] 0.0, 128
        %v552 = vpop.trf.xlu0
        %v553 = vpop.trf.xlu0
        %v554 = vpop.trf.xlu0
        %v555 = vpop.trf.xlu0
        %v556 = vpop.trf.xlu0
        %v557 = vpop.trf.xlu0
        %v558 = vpop.trf.xlu0
        %v559 = vpop.trf.xlu0
        %v560 = vpop.trf.xlu0
        %v561 = vpop.trf.xlu0
        %v562 = vpop.trf.xlu0
        %v563 = vpop.trf.xlu0
        %v564 = vpop.trf.xlu0
        %v565 = vpop.trf.xlu0
        %v566 = vpop.trf.xlu0
        %v567 = vpop.trf.xlu0
        %568 = vxpose.xlu0.b32.start [1/16] %v338, 128
        %569 = vxpose.xlu0.b32.cont [2/16] 0.0, 128
        %570 = vxpose.xlu0.b32.cont [3/16] 0.0, 128
        %571 = vxpose.xlu0.b32.cont [4/16] 0.0, 128
        %572 = vxpose.xlu0.b32.cont [5/16] 0.0, 128
        %573 = vxpose.xlu0.b32.cont [6/16] 0.0, 128
        %574 = vxpose.xlu0.b32.cont [7/16] 0.0, 128
        %575 = vxpose.xlu0.b32.cont [8/16] 0.0, 128
        %576 = vxpose.xlu0.b32.cont [9/16] 0.0, 128
        %577 = vxpose.xlu0.b32.cont [10/16] 0.0, 128
        %578 = vxpose.xlu0.b32.cont [11/16] 0.0, 128
        %579 = vxpose.xlu0.b32.cont [12/16] 0.0, 128
        %580 = vxpose.xlu0.b32.cont [13/16] 0.0, 128
        %581 = vxpose.xlu0.b32.cont [14/16] 0.0, 128
        %582 = vxpose.xlu0.b32.cont [15/16] 0.0, 128
        %583 = vxpose.xlu0.b32.end [16/16] 0.0, 128
        %v584 = vpop.trf.xlu0
        %v585 = vpop.trf.xlu0
        %v586 = vpop.trf.xlu0
        %v587 = vpop.trf.xlu0
        %v588 = vpop.trf.xlu0
        %v589 = vpop.trf.xlu0
        %v590 = vpop.trf.xlu0
        %v591 = vpop.trf.xlu0
        %v592 = vpop.trf.xlu0
        %v593 = vpop.trf.xlu0
        %v594 = vpop.trf.xlu0
        %v595 = vpop.trf.xlu0
        %v596 = vpop.trf.xlu0
        %v597 = vpop.trf.xlu0
        %v598 = vpop.trf.xlu0
        %v599 = vpop.trf.xlu0
        %600 = vxpose.xlu0.b32.start [1/16] %v335, 128
        %601 = vxpose.xlu0.b32.cont [2/16] 0.0, 128
        %602 = vxpose.xlu0.b32.cont [3/16] 0.0, 128
        %603 = vxpose.xlu0.b32.cont [4/16] 0.0, 128
        %604 = vxpose.xlu0.b32.cont [5/16] 0.0, 128
        %605 = vxpose.xlu0.b32.cont [6/16] 0.0, 128
        %606 = vxpose.xlu0.b32.cont [7/16] 0.0, 128
        %607 = vxpose.xlu0.b32.cont [8/16] 0.0, 128
        %608 = vxpose.xlu0.b32.cont [9/16] 0.0, 128
        %609 = vxpose.xlu0.b32.cont [10/16] 0.0, 128
        %610 = vxpose.xlu0.b32.cont [11/16] 0.0, 128
        %611 = vxpose.xlu0.b32.cont [12/16] 0.0, 128
        %612 = vxpose.xlu0.b32.cont [13/16] 0.0, 128
        %613 = vxpose.xlu0.b32.cont [14/16] 0.0, 128
        %614 = vxpose.xlu0.b32.cont [15/16] 0.0, 128
        %615 = vxpose.xlu0.b32.end [16/16] 0.0, 128
        %v616 = vpop.trf.xlu0
        %v617 = vpop.trf.xlu0
        %v618 = vpop.trf.xlu0
        %v619 = vpop.trf.xlu0
        %v620 = vpop.trf.xlu0
        %v621 = vpop.trf.xlu0
        %v622 = vpop.trf.xlu0
        %v623 = vpop.trf.xlu0
        %v624 = vpop.trf.xlu0
        %v625 = vpop.trf.xlu0
        %v626 = vpop.trf.xlu0
        %v627 = vpop.trf.xlu0
        %v628 = vpop.trf.xlu0
        %v629 = vpop.trf.xlu0
        %v630 = vpop.trf.xlu0
        %v631 = vpop.trf.xlu0
        %632 = vxpose.xlu0.b32.start [1/16] %v339, 128
        %633 = vxpose.xlu0.b32.cont [2/16] 0.0, 128
        %634 = vxpose.xlu0.b32.cont [3/16] 0.0, 128
        %635 = vxpose.xlu0.b32.cont [4/16] 0.0, 128
        %636 = vxpose.xlu0.b32.cont [5/16] 0.0, 128
        %637 = vxpose.xlu0.b32.cont [6/16] 0.0, 128
        %638 = vxpose.xlu0.b32.cont [7/16] 0.0, 128
        %639 = vxpose.xlu0.b32.cont [8/16] 0.0, 128
        %640 = vxpose.xlu0.b32.cont [9/16] 0.0, 128
        %641 = vxpose.xlu0.b32.cont [10/16] 0.0, 128
        %642 = vxpose.xlu0.b32.cont [11/16] 0.0, 128
        %643 = vxpose.xlu0.b32.cont [12/16] 0.0, 128
        %644 = vxpose.xlu0.b32.cont [13/16] 0.0, 128
        %645 = vxpose.xlu0.b32.cont [14/16] 0.0, 128
        %646 = vxpose.xlu0.b32.cont [15/16] 0.0, 128
        %647 = vxpose.xlu0.b32.end [16/16] 0.0, 128
        %v648 = vpop.trf.xlu0
        %v649 = vpop.trf.xlu0
        %v650 = vpop.trf.xlu0
        %v651 = vpop.trf.xlu0
        %v652 = vpop.trf.xlu0
        %v653 = vpop.trf.xlu0
        %v654 = vpop.trf.xlu0
        %v655 = vpop.trf.xlu0
        %v656 = vpop.trf.xlu0
        %v657 = vpop.trf.xlu0
        %v658 = vpop.trf.xlu0
        %v659 = vpop.trf.xlu0
        %v660 = vpop.trf.xlu0
        %v661 = vpop.trf.xlu0
        %v662 = vpop.trf.xlu0
        %v663 = vpop.trf.xlu0
        %664 = vxpose.xlu0.b32.start [1/16] %v380, 128
        %665 = vxpose.xlu0.b32.cont [2/16] 0.0, 128
        %666 = vxpose.xlu0.b32.cont [3/16] 0.0, 128
        %667 = vxpose.xlu0.b32.cont [4/16] 0.0, 128
        %668 = vxpose.xlu0.b32.cont [5/16] 0.0, 128
        %669 = vxpose.xlu0.b32.cont [6/16] 0.0, 128
        %670 = vxpose.xlu0.b32.cont [7/16] 0.0, 128
        %671 = vxpose.xlu0.b32.cont [8/16] 0.0, 128
        %672 = vxpose.xlu0.b32.cont [9/16] 0.0, 128
        %673 = vxpose.xlu0.b32.cont [10/16] 0.0, 128
        %674 = vxpose.xlu0.b32.cont [11/16] 0.0, 128
        %675 = vxpose.xlu0.b32.cont [12/16] 0.0, 128
        %676 = vxpose.xlu0.b32.cont [13/16] 0.0, 128
        %677 = vxpose.xlu0.b32.cont [14/16] 0.0, 128
        %678 = vxpose.xlu0.b32.cont [15/16] 0.0, 128
        %679 = vxpose.xlu0.b32.end [16/16] 0.0, 128
        %v680 = vpop.trf.xlu0
        %v681 = vpop.trf.xlu0
        %v682 = vpop.trf.xlu0
        %v683 = vpop.trf.xlu0
        %v684 = vpop.trf.xlu0
        %v685 = vpop.trf.xlu0
        %v686 = vpop.trf.xlu0
        %v687 = vpop.trf.xlu0
        %v688 = vpop.trf.xlu0
        %v689 = vpop.trf.xlu0
        %v690 = vpop.trf.xlu0
        %v691 = vpop.trf.xlu0
        %v692 = vpop.trf.xlu0
        %v693 = vpop.trf.xlu0
        %v694 = vpop.trf.xlu0
        %v695 = vpop.trf.xlu0
        %696 = vxpose.xlu0.b32.start [1/16] %v404, 128
        %697 = vxpose.xlu0.b32.cont [2/16] 0.0, 128
        %698 = vxpose.xlu0.b32.cont [3/16] 0.0, 128
        %699 = vxpose.xlu0.b32.cont [4/16] 0.0, 128
        %700 = vxpose.xlu0.b32.cont [5/16] 0.0, 128
        %701 = vxpose.xlu0.b32.cont [6/16] 0.0, 128
        %702 = vxpose.xlu0.b32.cont [7/16] 0.0, 128
        %703 = vxpose.xlu0.b32.cont [8/16] 0.0, 128
        %704 = vxpose.xlu0.b32.cont [9/16] 0.0, 128
        %705 = vxpose.xlu0.b32.cont [10/16] 0.0, 128
        %706 = vxpose.xlu0.b32.cont [11/16] 0.0, 128
        %707 = vxpose.xlu0.b32.cont [12/16] 0.0, 128
        %708 = vxpose.xlu0.b32.cont [13/16] 0.0, 128
        %709 = vxpose.xlu0.b32.cont [14/16] 0.0, 128
        %710 = vxpose.xlu0.b32.cont [15/16] 0.0, 128
        %711 = vxpose.xlu0.b32.end [16/16] 0.0, 128
        %v712 = vpop.trf.xlu0
        %v713 = vpop.trf.xlu0
        %v714 = vpop.trf.xlu0
        %v715 = vpop.trf.xlu0
        %v716 = vpop.trf.xlu0
        %v717 = vpop.trf.xlu0
        %v718 = vpop.trf.xlu0
        %v719 = vpop.trf.xlu0
        %v720 = vpop.trf.xlu0
        %v721 = vpop.trf.xlu0
        %v722 = vpop.trf.xlu0
        %v723 = vpop.trf.xlu0
        %v724 = vpop.trf.xlu0
        %v725 = vpop.trf.xlu0
        %v726 = vpop.trf.xlu0
        %v727 = vpop.trf.xlu0
        %728 = vxpose.xlu0.b32.start [1/16] %v387, 128
        %729 = vxpose.xlu0.b32.cont [2/16] 0.0, 128
        %730 = vxpose.xlu0.b32.cont [3/16] 0.0, 128
        %731 = vxpose.xlu0.b32.cont [4/16] 0.0, 128
        %732 = vxpose.xlu0.b32.cont [5/16] 0.0, 128
        %733 = vxpose.xlu0.b32.cont [6/16] 0.0, 128
        %734 = vxpose.xlu0.b32.cont [7/16] 0.0, 128
        %735 = vxpose.xlu0.b32.cont [8/16] 0.0, 128
        %736 = vxpose.xlu0.b32.cont [9/16] 0.0, 128
        %737 = vxpose.xlu0.b32.cont [10/16] 0.0, 128
        %738 = vxpose.xlu0.b32.cont [11/16] 0.0, 128
        %739 = vxpose.xlu0.b32.cont [12/16] 0.0, 128
        %740 = vxpose.xlu0.b32.cont [13/16] 0.0, 128
        %741 = vxpose.xlu0.b32.cont [14/16] 0.0, 128
        %742 = vxpose.xlu0.b32.cont [15/16] 0.0, 128
        %743 = vxpose.xlu0.b32.end [16/16] 0.0, 128
        %v744 = vpop.trf.xlu0
        %v745 = vpop.trf.xlu0
        %v746 = vpop.trf.xlu0
        %v747 = vpop.trf.xlu0
        %v748 = vpop.trf.xlu0
        %v749 = vpop.trf.xlu0
        %v750 = vpop.trf.xlu0
        %v751 = vpop.trf.xlu0
        %v752 = vpop.trf.xlu0
        %v753 = vpop.trf.xlu0
        %v754 = vpop.trf.xlu0
        %v755 = vpop.trf.xlu0
        %v756 = vpop.trf.xlu0
        %v757 = vpop.trf.xlu0
        %v758 = vpop.trf.xlu0
        %v759 = vpop.trf.xlu0
        %760 = vxpose.xlu0.b32.start [1/16] %v405, 128
        %761 = vxpose.xlu0.b32.cont [2/16] 0.0, 128
        %762 = vxpose.xlu0.b32.cont [3/16] 0.0, 128
        %763 = vxpose.xlu0.b32.cont [4/16] 0.0, 128
        %764 = vxpose.xlu0.b32.cont [5/16] 0.0, 128
        %765 = vxpose.xlu0.b32.cont [6/16] 0.0, 128
        %766 = vxpose.xlu0.b32.cont [7/16] 0.0, 128
        %767 = vxpose.xlu0.b32.cont [8/16] 0.0, 128
        %768 = vxpose.xlu0.b32.cont [9/16] 0.0, 128
        %769 = vxpose.xlu0.b32.cont [10/16] 0.0, 128
        %770 = vxpose.xlu0.b32.cont [11/16] 0.0, 128
        %771 = vxpose.xlu0.b32.cont [12/16] 0.0, 128
        %772 = vxpose.xlu0.b32.cont [13/16] 0.0, 128
        %773 = vxpose.xlu0.b32.cont [14/16] 0.0, 128
        %774 = vxpose.xlu0.b32.cont [15/16] 0.0, 128
        %775 = vxpose.xlu0.b32.end [16/16] 0.0, 128
        %v776 = vpop.trf.xlu0
        %v777 = vpop.trf.xlu0
        %v778 = vpop.trf.xlu0
        %v779 = vpop.trf.xlu0
        %v780 = vpop.trf.xlu0
        %v781 = vpop.trf.xlu0
        %v782 = vpop.trf.xlu0
        %v783 = vpop.trf.xlu0
        %v784 = vpop.trf.xlu0
        %v785 = vpop.trf.xlu0
        %v786 = vpop.trf.xlu0
        %v787 = vpop.trf.xlu0
        %v788 = vpop.trf.xlu0
        %v789 = vpop.trf.xlu0
        %v790 = vpop.trf.xlu0
        %v791 = vpop.trf.xlu0
        %792 = vxpose.xlu0.b32.start [1/16] %v396, 128
        %793 = vxpose.xlu0.b32.cont [2/16] 0.0, 128
        %794 = vxpose.xlu0.b32.cont [3/16] 0.0, 128
        %795 = vxpose.xlu0.b32.cont [4/16] 0.0, 128
        %796 = vxpose.xlu0.b32.cont [5/16] 0.0, 128
        %797 = vxpose.xlu0.b32.cont [6/16] 0.0, 128
        %798 = vxpose.xlu0.b32.cont [7/16] 0.0, 128
        %799 = vxpose.xlu0.b32.cont [8/16] 0.0, 128
        %800 = vxpose.xlu0.b32.cont [9/16] 0.0, 128
        %801 = vxpose.xlu0.b32.cont [10/16] 0.0, 128
        %802 = vxpose.xlu0.b32.cont [11/16] 0.0, 128
        %803 = vxpose.xlu0.b32.cont [12/16] 0.0, 128
        %804 = vxpose.xlu0.b32.cont [13/16] 0.0, 128
        %805 = vxpose.xlu0.b32.cont [14/16] 0.0, 128
        %806 = vxpose.xlu0.b32.cont [15/16] 0.0, 128
        %807 = vxpose.xlu0.b32.end [16/16] 0.0, 128
        %v808 = vpop.trf.xlu0
        %v809 = vpop.trf.xlu0
        %v810 = vpop.trf.xlu0
        %v811 = vpop.trf.xlu0
        %v812 = vpop.trf.xlu0
        %v813 = vpop.trf.xlu0
        %v814 = vpop.trf.xlu0
        %v815 = vpop.trf.xlu0
        %v816 = vpop.trf.xlu0
        %v817 = vpop.trf.xlu0
        %v818 = vpop.trf.xlu0
        %v819 = vpop.trf.xlu0
        %v820 = vpop.trf.xlu0
        %v821 = vpop.trf.xlu0
        %v822 = vpop.trf.xlu0
        %v823 = vpop.trf.xlu0
        %824 = vxpose.xlu0.b32.start [1/16] %v406, 128
        %825 = vxpose.xlu0.b32.cont [2/16] 0.0, 128
        %826 = vxpose.xlu0.b32.cont [3/16] 0.0, 128
        %827 = vxpose.xlu0.b32.cont [4/16] 0.0, 128
        %828 = vxpose.xlu0.b32.cont [5/16] 0.0, 128
        %829 = vxpose.xlu0.b32.cont [6/16] 0.0, 128
        %830 = vxpose.xlu0.b32.cont [7/16] 0.0, 128
        %831 = vxpose.xlu0.b32.cont [8/16] 0.0, 128
        %832 = vxpose.xlu0.b32.cont [9/16] 0.0, 128
        %833 = vxpose.xlu0.b32.cont [10/16] 0.0, 128
        %834 = vxpose.xlu0.b32.cont [11/16] 0.0, 128
        %835 = vxpose.xlu0.b32.cont [12/16] 0.0, 128
        %836 = vxpose.xlu0.b32.cont [13/16] 0.0, 128
        %837 = vxpose.xlu0.b32.cont [14/16] 0.0, 128
        %838 = vxpose.xlu0.b32.cont [15/16] 0.0, 128
        %839 = vxpose.xlu0.b32.end [16/16] 0.0, 128
        %v840 = vpop.trf.xlu0
        %v841 = vpop.trf.xlu0
        %v842 = vpop.trf.xlu0
        %v843 = vpop.trf.xlu0
        %v844 = vpop.trf.xlu0
        %v845 = vpop.trf.xlu0
        %v846 = vpop.trf.xlu0
        %v847 = vpop.trf.xlu0
        %v848 = vpop.trf.xlu0
        %v849 = vpop.trf.xlu0
        %v850 = vpop.trf.xlu0
        %v851 = vpop.trf.xlu0
        %v852 = vpop.trf.xlu0
        %v853 = vpop.trf.xlu0
        %v854 = vpop.trf.xlu0
        %v855 = vpop.trf.xlu0
        %856 = vxpose.xlu0.b32.start [1/16] %v403, 128
        %857 = vxpose.xlu0.b32.cont [2/16] 0.0, 128
        %858 = vxpose.xlu0.b32.cont [3/16] 0.0, 128
        %859 = vxpose.xlu0.b32.cont [4/16] 0.0, 128
        %860 = vxpose.xlu0.b32.cont [5/16] 0.0, 128
        %861 = vxpose.xlu0.b32.cont [6/16] 0.0, 128
        %862 = vxpose.xlu0.b32.cont [7/16] 0.0, 128
        %863 = vxpose.xlu0.b32.cont [8/16] 0.0, 128
        %864 = vxpose.xlu0.b32.cont [9/16] 0.0, 128
        %865 = vxpose.xlu0.b32.cont [10/16] 0.0, 128
        %866 = vxpose.xlu0.b32.cont [11/16] 0.0, 128
        %867 = vxpose.xlu0.b32.cont [12/16] 0.0, 128
        %868 = vxpose.xlu0.b32.cont [13/16] 0.0, 128
        %869 = vxpose.xlu0.b32.cont [14/16] 0.0, 128
        %870 = vxpose.xlu0.b32.cont [15/16] 0.0, 128
        %871 = vxpose.xlu0.b32.end [16/16] 0.0, 128
        %v872 = vpop.trf.xlu0
        %v873 = vpop.trf.xlu0
        %v874 = vpop.trf.xlu0
        %v875 = vpop.trf.xlu0
        %v876 = vpop.trf.xlu0
        %v877 = vpop.trf.xlu0
        %v878 = vpop.trf.xlu0
        %v879 = vpop.trf.xlu0
        %v880 = vpop.trf.xlu0
        %v881 = vpop.trf.xlu0
        %v882 = vpop.trf.xlu0
        %v883 = vpop.trf.xlu0
        %v884 = vpop.trf.xlu0
        %v885 = vpop.trf.xlu0
        %v886 = vpop.trf.xlu0
        %v887 = vpop.trf.xlu0
        %888 = vxpose.xlu0.b32.start [1/16] %v407, 128
        %889 = vxpose.xlu0.b32.cont [2/16] 0.0, 128
        %890 = vxpose.xlu0.b32.cont [3/16] 0.0, 128
        %891 = vxpose.xlu0.b32.cont [4/16] 0.0, 128
        %892 = vxpose.xlu0.b32.cont [5/16] 0.0, 128
        %893 = vxpose.xlu0.b32.cont [6/16] 0.0, 128
        %894 = vxpose.xlu0.b32.cont [7/16] 0.0, 128
        %895 = vxpose.xlu0.b32.cont [8/16] 0.0, 128
        %896 = vxpose.xlu0.b32.cont [9/16] 0.0, 128
        %897 = vxpose.xlu0.b32.cont [10/16] 0.0, 128
        %898 = vxpose.xlu0.b32.cont [11/16] 0.0, 128
        %899 = vxpose.xlu0.b32.cont [12/16] 0.0, 128
        %900 = vxpose.xlu0.b32.cont [13/16] 0.0, 128
        %901 = vxpose.xlu0.b32.cont [14/16] 0.0, 128
        %902 = vxpose.xlu0.b32.cont [15/16] 0.0, 128
        %903 = vxpose.xlu0.b32.end [16/16] 0.0, 128
        %v904 = vpop.trf.xlu0
        %v905 = vpop.trf.xlu0
        %v906 = vpop.trf.xlu0
        %v907 = vpop.trf.xlu0
        %v908 = vpop.trf.xlu0
        %v909 = vpop.trf.xlu0
        %v910 = vpop.trf.xlu0
        %v911 = vpop.trf.xlu0
        %v912 = vpop.trf.xlu0
        %v913 = vpop.trf.xlu0
        %v914 = vpop.trf.xlu0
        %v915 = vpop.trf.xlu0
        %v916 = vpop.trf.xlu0
        %v917 = vpop.trf.xlu0
        %v918 = vpop.trf.xlu0
        %v919 = vpop.trf.xlu0
        %v920 = vcombine.low %v424, %v488
        %v921 = vcombine.high %v424, %v488
        %v923 = vunpack.c.l.s4 1983009808
        %v924 = vunpack.c.0.s8 %v923
        %v925 = vlaneseq
        %v926 = vshrl.u32 %v925, 7
        %v927 = vsub.s32 %v924, %v926
        %v928 = vrot.slane %v920, %v927
        %v930 = vunpack.c.l.s4 1983009808
        %v931 = vunpack.c.0.s8 %v930
        %v932 = vlaneseq
        %v933 = vshrl.u32 %v932, 7
        %v934 = vsub.s32 %v931, %v933
        %v935 = vrot.slane %v921, %v934
        %v936 = vcombine.low %v456, %v520
        %v937 = vcombine.high %v456, %v520
        %v939 = vunpack.c.l.s4 1983009808
        %v940 = vunpack.c.0.s8 %v939
        %v941 = vlaneseq
        %v942 = vshrl.u32 %v941, 7
        %v943 = vsub.s32 %v940, %v942
        %v944 = vrot.slane %v936, %v943
        %v946 = vunpack.c.l.s4 1983009808
        %v947 = vunpack.c.0.s8 %v946
        %v948 = vlaneseq
        %v949 = vshrl.u32 %v948, 7
        %v950 = vsub.s32 %v947, %v949
        %v951 = vrot.slane %v937, %v950
        %v952 = vcombine.low %v552, %v616
        %v953 = vcombine.high %v552, %v616
        %v955 = vunpack.c.l.s4 1983009808
        %v956 = vunpack.c.0.s8 %v955
        %v957 = vlaneseq
        %v958 = vshrl.u32 %v957, 7
        %v959 = vsub.s32 %v956, %v958
        %v960 = vrot.slane %v952, %v959
        %v962 = vunpack.c.l.s4 1983009808
        %v963 = vunpack.c.0.s8 %v962
        %v964 = vlaneseq
        %v965 = vshrl.u32 %v964, 7
        %v966 = vsub.s32 %v963, %v965
        %v967 = vrot.slane %v953, %v966
        %v968 = vcombine.low %v584, %v648
        %v969 = vcombine.high %v584, %v648
        %v971 = vunpack.c.l.s4 1983009808
        %v972 = vunpack.c.0.s8 %v971
        %v973 = vlaneseq
        %v974 = vshrl.u32 %v973, 7
        %v975 = vsub.s32 %v972, %v974
        %v976 = vrot.slane %v968, %v975
        %v978 = vunpack.c.l.s4 1983009808
        %v979 = vunpack.c.0.s8 %v978
        %v980 = vlaneseq
        %v981 = vshrl.u32 %v980, 7
        %v982 = vsub.s32 %v979, %v981
        %v983 = vrot.slane %v969, %v982
        %v984 = vcombine.low %v928, %v944
        %v985 = vcombine.high %v928, %v944
        %v987 = vunpack.c.l.s4 1934713408
        %v988 = vunpack.c.0.s8 %v987
        %v989 = vlaneseq
        %v990 = vshrl.u32 %v989, 7
        %v991 = vsub.s32 %v988, %v990
        %v992 = vrot.slane %v984, %v991
        %v994 = vunpack.c.l.s4 1934713408
        %v995 = vunpack.c.0.s8 %v994
        %v996 = vlaneseq
        %v997 = vshrl.u32 %v996, 7
        %v998 = vsub.s32 %v995, %v997
        %v999 = vrot.slane %v985, %v998
        %v1000 = vcombine.low %v935, %v951
        %v1001 = vcombine.high %v935, %v951
        %v1003 = vunpack.c.l.s4 1934713408
        %v1004 = vunpack.c.0.s8 %v1003
        %v1005 = vlaneseq
        %v1006 = vshrl.u32 %v1005, 7
        %v1007 = vsub.s32 %v1004, %v1006
        %v1008 = vrot.slane %v1000, %v1007
        %v1010 = vunpack.c.l.s4 1934713408
        %v1011 = vunpack.c.0.s8 %v1010
        %v1012 = vlaneseq
        %v1013 = vshrl.u32 %v1012, 7
        %v1014 = vsub.s32 %v1011, %v1013
        %v1015 = vrot.slane %v1001, %v1014
        %v1016 = vcombine.low %v960, %v976
        %v1017 = vcombine.high %v960, %v976
        %v1019 = vunpack.c.l.s4 1934713408
        %v1020 = vunpack.c.0.s8 %v1019
        %v1021 = vlaneseq
        %v1022 = vshrl.u32 %v1021, 7
        %v1023 = vsub.s32 %v1020, %v1022
        %v1024 = vrot.slane %v1016, %v1023
        %v1026 = vunpack.c.l.s4 1934713408
        %v1027 = vunpack.c.0.s8 %v1026
        %v1028 = vlaneseq
        %v1029 = vshrl.u32 %v1028, 7
        %v1030 = vsub.s32 %v1027, %v1029
        %v1031 = vrot.slane %v1017, %v1030
        %v1032 = vcombine.low %v967, %v983
        %v1033 = vcombine.high %v967, %v983
        %v1035 = vunpack.c.l.s4 1934713408
        %v1036 = vunpack.c.0.s8 %v1035
        %v1037 = vlaneseq
        %v1038 = vshrl.u32 %v1037, 7
        %v1039 = vsub.s32 %v1036, %v1038
        %v1040 = vrot.slane %v1032, %v1039
        %v1042 = vunpack.c.l.s4 1934713408
        %v1043 = vunpack.c.0.s8 %v1042
        %v1044 = vlaneseq
        %v1045 = vshrl.u32 %v1044, 7
        %v1046 = vsub.s32 %v1043, %v1045
        %v1047 = vrot.slane %v1033, %v1046
        %v1048 = vcombine.low %v992, %v1024
        %v1049 = vcombine.high %v992, %v1024
        %v1050 = vcombine.low %v999, %v1031
        %v1051 = vcombine.high %v999, %v1031
        %v1052 = vcombine.low %v1008, %v1040
        %v1053 = vcombine.high %v1008, %v1040
        %v1054 = vcombine.low %v1015, %v1047
        %v1055 = vcombine.high %v1015, %v1047
        %v1056 = vcombine.low %v680, %v744
        %v1057 = vcombine.high %v680, %v744
        %v1059 = vunpack.c.l.s4 1983009808
        %v1060 = vunpack.c.0.s8 %v1059
        %v1061 = vlaneseq
        %v1062 = vshrl.u32 %v1061, 7
        %v1063 = vsub.s32 %v1060, %v1062
        %v1064 = vrot.slane %v1056, %v1063
        %v1066 = vunpack.c.l.s4 1983009808
        %v1067 = vunpack.c.0.s8 %v1066
        %v1068 = vlaneseq
        %v1069 = vshrl.u32 %v1068, 7
        %v1070 = vsub.s32 %v1067, %v1069
        %v1071 = vrot.slane %v1057, %v1070
        %v1072 = vcombine.low %v712, %v776
        %v1073 = vcombine.high %v712, %v776
        %v1075 = vunpack.c.l.s4 1983009808
        %v1076 = vunpack.c.0.s8 %v1075
        %v1077 = vlaneseq
        %v1078 = vshrl.u32 %v1077, 7
        %v1079 = vsub.s32 %v1076, %v1078
        %v1080 = vrot.slane %v1072, %v1079
        %v1082 = vunpack.c.l.s4 1983009808
        %v1083 = vunpack.c.0.s8 %v1082
        %v1084 = vlaneseq
        %v1085 = vshrl.u32 %v1084, 7
        %v1086 = vsub.s32 %v1083, %v1085
        %v1087 = vrot.slane %v1073, %v1086
        %v1088 = vcombine.low %v808, %v872
        %v1089 = vcombine.high %v808, %v872
        %v1091 = vunpack.c.l.s4 1983009808
        %v1092 = vunpack.c.0.s8 %v1091
        %v1093 = vlaneseq
        %v1094 = vshrl.u32 %v1093, 7
        %v1095 = vsub.s32 %v1092, %v1094
        %v1096 = vrot.slane %v1088, %v1095
        %v1098 = vunpack.c.l.s4 1983009808
        %v1099 = vunpack.c.0.s8 %v1098
        %v1100 = vlaneseq
        %v1101 = vshrl.u32 %v1100, 7
        %v1102 = vsub.s32 %v1099, %v1101
        %v1103 = vrot.slane %v1089, %v1102
        %v1104 = vcombine.low %v840, %v904
        %v1105 = vcombine.high %v840, %v904
        %v1107 = vunpack.c.l.s4 1983009808
        %v1108 = vunpack.c.0.s8 %v1107
        %v1109 = vlaneseq
        %v1110 = vshrl.u32 %v1109, 7
        %v1111 = vsub.s32 %v1108, %v1110
        %v1112 = vrot.slane %v1104, %v1111
        %v1114 = vunpack.c.l.s4 1983009808
        %v1115 = vunpack.c.0.s8 %v1114
        %v1116 = vlaneseq
        %v1117 = vshrl.u32 %v1116, 7
        %v1118 = vsub.s32 %v1115, %v1117
        %v1119 = vrot.slane %v1105, %v1118
        %v1120 = vcombine.low %v1064, %v1080
        %v1121 = vcombine.high %v1064, %v1080
        %v1123 = vunpack.c.l.s4 1934713408
        %v1124 = vunpack.c.0.s8 %v1123
        %v1125 = vlaneseq
        %v1126 = vshrl.u32 %v1125, 7
        %v1127 = vsub.s32 %v1124, %v1126
        %v1128 = vrot.slane %v1120, %v1127
        %v1130 = vunpack.c.l.s4 1934713408
        %v1131 = vunpack.c.0.s8 %v1130
        %v1132 = vlaneseq
        %v1133 = vshrl.u32 %v1132, 7
        %v1134 = vsub.s32 %v1131, %v1133
        %v1135 = vrot.slane %v1121, %v1134
        %v1136 = vcombine.low %v1071, %v1087
        %v1137 = vcombine.high %v1071, %v1087
        %v1139 = vunpack.c.l.s4 1934713408
        %v1140 = vunpack.c.0.s8 %v1139
        %v1141 = vlaneseq
        %v1142 = vshrl.u32 %v1141, 7
        %v1143 = vsub.s32 %v1140, %v1142
        %v1144 = vrot.slane %v1136, %v1143
        %v1146 = vunpack.c.l.s4 1934713408
        %v1147 = vunpack.c.0.s8 %v1146
        %v1148 = vlaneseq
        %v1149 = vshrl.u32 %v1148, 7
        %v1150 = vsub.s32 %v1147, %v1149
        %v1151 = vrot.slane %v1137, %v1150
        %v1152 = vcombine.low %v1096, %v1112
        %v1153 = vcombine.high %v1096, %v1112
        %v1155 = vunpack.c.l.s4 1934713408
        %v1156 = vunpack.c.0.s8 %v1155
        %v1157 = vlaneseq
        %v1158 = vshrl.u32 %v1157, 7
        %v1159 = vsub.s32 %v1156, %v1158
        %v1160 = vrot.slane %v1152, %v1159
        %v1162 = vunpack.c.l.s4 1934713408
        %v1163 = vunpack.c.0.s8 %v1162
        %v1164 = vlaneseq
        %v1165 = vshrl.u32 %v1164, 7
        %v1166 = vsub.s32 %v1163, %v1165
        %v1167 = vrot.slane %v1153, %v1166
        %v1168 = vcombine.low %v1103, %v1119
        %v1169 = vcombine.high %v1103, %v1119
        %v1171 = vunpack.c.l.s4 1934713408
        %v1172 = vunpack.c.0.s8 %v1171
        %v1173 = vlaneseq
        %v1174 = vshrl.u32 %v1173, 7
        %v1175 = vsub.s32 %v1172, %v1174
        %v1176 = vrot.slane %v1168, %v1175
        %v1178 = vunpack.c.l.s4 1934713408
        %v1179 = vunpack.c.0.s8 %v1178
        %v1180 = vlaneseq
        %v1181 = vshrl.u32 %v1180, 7
        %v1182 = vsub.s32 %v1179, %v1181
        %v1183 = vrot.slane %v1169, %v1182
        %v1184 = vcombine.low %v1128, %v1160
        %v1185 = vcombine.high %v1128, %v1160
        %v1186 = vcombine.low %v1135, %v1167
        %v1187 = vcombine.high %v1135, %v1167
        %v1188 = vcombine.low %v1144, %v1176
        %v1189 = vcombine.high %v1144, %v1176
        %v1190 = vcombine.low %v1151, %v1183
        %v1191 = vcombine.high %v1151, %v1183
        %v1192 = vcombine.low %v1048, %v1050
        %v1193 = vcombine.high %v1048, %v1050
        %v1195 = vunpack.c.l.s4 1983009808
        %v1196 = vunpack.c.0.s8 %v1195
        %v1197 = vlaneseq
        %v1198 = vshrl.u32 %v1197, 7
        %v1199 = vsub.s32 %v1196, %v1198
        %v1200 = vrot.slane %v1192, %v1199
        %v1202 = vunpack.c.l.s4 1983009808
        %v1203 = vunpack.c.0.s8 %v1202
        %v1204 = vlaneseq
        %v1205 = vshrl.u32 %v1204, 7
        %v1206 = vsub.s32 %v1203, %v1205
        %v1207 = vrot.slane %v1193, %v1206
        %v1208 = vcombine.low %v1049, %v1051
        %v1209 = vcombine.high %v1049, %v1051
        %v1211 = vunpack.c.l.s4 1983009808
        %v1212 = vunpack.c.0.s8 %v1211
        %v1213 = vlaneseq
        %v1214 = vshrl.u32 %v1213, 7
        %v1215 = vsub.s32 %v1212, %v1214
        %v1216 = vrot.slane %v1208, %v1215
        %v1218 = vunpack.c.l.s4 1983009808
        %v1219 = vunpack.c.0.s8 %v1218
        %v1220 = vlaneseq
        %v1221 = vshrl.u32 %v1220, 7
        %v1222 = vsub.s32 %v1219, %v1221
        %v1223 = vrot.slane %v1209, %v1222
        %v1224 = vcombine.low %v1052, %v1054
        %v1225 = vcombine.high %v1052, %v1054
        %v1227 = vunpack.c.l.s4 1983009808
        %v1228 = vunpack.c.0.s8 %v1227
        %v1229 = vlaneseq
        %v1230 = vshrl.u32 %v1229, 7
        %v1231 = vsub.s32 %v1228, %v1230
        %v1232 = vrot.slane %v1224, %v1231
        %v1234 = vunpack.c.l.s4 1983009808
        %v1235 = vunpack.c.0.s8 %v1234
        %v1236 = vlaneseq
        %v1237 = vshrl.u32 %v1236, 7
        %v1238 = vsub.s32 %v1235, %v1237
        %v1239 = vrot.slane %v1225, %v1238
        %v1240 = vcombine.low %v1053, %v1055
        %v1241 = vcombine.high %v1053, %v1055
        %v1243 = vunpack.c.l.s4 1983009808
        %v1244 = vunpack.c.0.s8 %v1243
        %v1245 = vlaneseq
        %v1246 = vshrl.u32 %v1245, 7
        %v1247 = vsub.s32 %v1244, %v1246
        %v1248 = vrot.slane %v1240, %v1247
        %v1250 = vunpack.c.l.s4 1983009808
        %v1251 = vunpack.c.0.s8 %v1250
        %v1252 = vlaneseq
        %v1253 = vshrl.u32 %v1252, 7
        %v1254 = vsub.s32 %v1251, %v1253
        %v1255 = vrot.slane %v1241, %v1254
        %v1256 = vcombine.low %v1200, %v1216
        %v1257 = vcombine.high %v1200, %v1216
        %v1259 = vunpack.c.l.s4 1934713408
        %v1260 = vunpack.c.0.s8 %v1259
        %v1261 = vlaneseq
        %v1262 = vshrl.u32 %v1261, 7
        %v1263 = vsub.s32 %v1260, %v1262
        %v1264 = vrot.slane %v1256, %v1263
        %v1266 = vunpack.c.l.s4 1934713408
        %v1267 = vunpack.c.0.s8 %v1266
        %v1268 = vlaneseq
        %v1269 = vshrl.u32 %v1268, 7
        %v1270 = vsub.s32 %v1267, %v1269
        %v1271 = vrot.slane %v1257, %v1270
        %v1272 = vcombine.low %v1207, %v1223
        %v1273 = vcombine.high %v1207, %v1223
        %v1275 = vunpack.c.l.s4 1934713408
        %v1276 = vunpack.c.0.s8 %v1275
        %v1277 = vlaneseq
        %v1278 = vshrl.u32 %v1277, 7
        %v1279 = vsub.s32 %v1276, %v1278
        %v1280 = vrot.slane %v1272, %v1279
        %v1282 = vunpack.c.l.s4 1934713408
        %v1283 = vunpack.c.0.s8 %v1282
        %v1284 = vlaneseq
        %v1285 = vshrl.u32 %v1284, 7
        %v1286 = vsub.s32 %v1283, %v1285
        %v1287 = vrot.slane %v1273, %v1286
        %v1288 = vcombine.low %v1232, %v1248
        %v1289 = vcombine.high %v1232, %v1248
        %v1291 = vunpack.c.l.s4 1934713408
        %v1292 = vunpack.c.0.s8 %v1291
        %v1293 = vlaneseq
        %v1294 = vshrl.u32 %v1293, 7
        %v1295 = vsub.s32 %v1292, %v1294
        %v1296 = vrot.slane %v1288, %v1295
        %v1298 = vunpack.c.l.s4 1934713408
        %v1299 = vunpack.c.0.s8 %v1298
        %v1300 = vlaneseq
        %v1301 = vshrl.u32 %v1300, 7
        %v1302 = vsub.s32 %v1299, %v1301
        %v1303 = vrot.slane %v1289, %v1302
        %v1304 = vcombine.low %v1239, %v1255
        %v1305 = vcombine.high %v1239, %v1255
        %v1307 = vunpack.c.l.s4 1934713408
        %v1308 = vunpack.c.0.s8 %v1307
        %v1309 = vlaneseq
        %v1310 = vshrl.u32 %v1309, 7
        %v1311 = vsub.s32 %v1308, %v1310
        %v1312 = vrot.slane %v1304, %v1311
        %v1314 = vunpack.c.l.s4 1934713408
        %v1315 = vunpack.c.0.s8 %v1314
        %v1316 = vlaneseq
        %v1317 = vshrl.u32 %v1316, 7
        %v1318 = vsub.s32 %v1315, %v1317
        %v1319 = vrot.slane %v1305, %v1318
        %v1320 = vcombine.low %v1264, %v1296
        %v1321 = vcombine.high %v1264, %v1296
        %v1322 = vcombine.low %v1271, %v1303
        %v1323 = vcombine.high %v1271, %v1303
        %v1324 = vcombine.low %v1280, %v1312
        %v1325 = vcombine.high %v1280, %v1312
        %v1326 = vcombine.low %v1287, %v1319
        %v1327 = vcombine.high %v1287, %v1319
        %v1328 = vcombine.low %v1184, %v1186
        %v1329 = vcombine.high %v1184, %v1186
        %v1331 = vunpack.c.l.s4 1983009808
        %v1332 = vunpack.c.0.s8 %v1331
        %v1333 = vlaneseq
        %v1334 = vshrl.u32 %v1333, 7
        %v1335 = vsub.s32 %v1332, %v1334
        %v1336 = vrot.slane %v1328, %v1335
        %v1338 = vunpack.c.l.s4 1983009808
        %v1339 = vunpack.c.0.s8 %v1338
        %v1340 = vlaneseq
        %v1341 = vshrl.u32 %v1340, 7
        %v1342 = vsub.s32 %v1339, %v1341
        %v1343 = vrot.slane %v1329, %v1342
        %v1344 = vcombine.low %v1185, %v1187
        %v1345 = vcombine.high %v1185, %v1187
        %v1347 = vunpack.c.l.s4 1983009808
        %v1348 = vunpack.c.0.s8 %v1347
        %v1349 = vlaneseq
        %v1350 = vshrl.u32 %v1349, 7
        %v1351 = vsub.s32 %v1348, %v1350
        %v1352 = vrot.slane %v1344, %v1351
        %v1354 = vunpack.c.l.s4 1983009808
        %v1355 = vunpack.c.0.s8 %v1354
        %v1356 = vlaneseq
        %v1357 = vshrl.u32 %v1356, 7
        %v1358 = vsub.s32 %v1355, %v1357
        %v1359 = vrot.slane %v1345, %v1358
        %v1360 = vcombine.low %v1188, %v1190
        %v1361 = vcombine.high %v1188, %v1190
        %v1363 = vunpack.c.l.s4 1983009808
        %v1364 = vunpack.c.0.s8 %v1363
        %v1365 = vlaneseq
        %v1366 = vshrl.u32 %v1365, 7
        %v1367 = vsub.s32 %v1364, %v1366
        %v1368 = vrot.slane %v1360, %v1367
        %v1370 = vunpack.c.l.s4 1983009808
        %v1371 = vunpack.c.0.s8 %v1370
        %v1372 = vlaneseq
        %v1373 = vshrl.u32 %v1372, 7
        %v1374 = vsub.s32 %v1371, %v1373
        %v1375 = vrot.slane %v1361, %v1374
        %v1376 = vcombine.low %v1189, %v1191
        %v1377 = vcombine.high %v1189, %v1191
        %v1379 = vunpack.c.l.s4 1983009808
        %v1380 = vunpack.c.0.s8 %v1379
        %v1381 = vlaneseq
        %v1382 = vshrl.u32 %v1381, 7
        %v1383 = vsub.s32 %v1380, %v1382
        %v1384 = vrot.slane %v1376, %v1383
        %v1386 = vunpack.c.l.s4 1983009808
        %v1387 = vunpack.c.0.s8 %v1386
        %v1388 = vlaneseq
        %v1389 = vshrl.u32 %v1388, 7
        %v1390 = vsub.s32 %v1387, %v1389
        %v1391 = vrot.slane %v1377, %v1390
        %v1392 = vcombine.low %v1336, %v1352
        %v1393 = vcombine.high %v1336, %v1352
        %v1395 = vunpack.c.l.s4 1934713408
        %v1396 = vunpack.c.0.s8 %v1395
        %v1397 = vlaneseq
        %v1398 = vshrl.u32 %v1397, 7
        %v1399 = vsub.s32 %v1396, %v1398
        %v1400 = vrot.slane %v1392, %v1399
        %v1402 = vunpack.c.l.s4 1934713408
        %v1403 = vunpack.c.0.s8 %v1402
        %v1404 = vlaneseq
        %v1405 = vshrl.u32 %v1404, 7
        %v1406 = vsub.s32 %v1403, %v1405
        %v1407 = vrot.slane %v1393, %v1406
        %v1408 = vcombine.low %v1343, %v1359
        %v1409 = vcombine.high %v1343, %v1359
        %v1411 = vunpack.c.l.s4 1934713408
        %v1412 = vunpack.c.0.s8 %v1411
        %v1413 = vlaneseq
        %v1414 = vshrl.u32 %v1413, 7
        %v1415 = vsub.s32 %v1412, %v1414
        %v1416 = vrot.slane %v1408, %v1415
        %v1418 = vunpack.c.l.s4 1934713408
        %v1419 = vunpack.c.0.s8 %v1418
        %v1420 = vlaneseq
        %v1421 = vshrl.u32 %v1420, 7
        %v1422 = vsub.s32 %v1419, %v1421
        %v1423 = vrot.slane %v1409, %v1422
        %v1424 = vcombine.low %v1368, %v1384
        %v1425 = vcombine.high %v1368, %v1384
        %v1427 = vunpack.c.l.s4 1934713408
        %v1428 = vunpack.c.0.s8 %v1427
        %v1429 = vlaneseq
        %v1430 = vshrl.u32 %v1429, 7
        %v1431 = vsub.s32 %v1428, %v1430
        %v1432 = vrot.slane %v1424, %v1431
        %v1434 = vunpack.c.l.s4 1934713408
        %v1435 = vunpack.c.0.s8 %v1434
        %v1436 = vlaneseq
        %v1437 = vshrl.u32 %v1436, 7
        %v1438 = vsub.s32 %v1435, %v1437
        %v1439 = vrot.slane %v1425, %v1438
        %v1440 = vcombine.low %v1375, %v1391
        %v1441 = vcombine.high %v1375, %v1391
        %v1443 = vunpack.c.l.s4 1934713408
        %v1444 = vunpack.c.0.s8 %v1443
        %v1445 = vlaneseq
        %v1446 = vshrl.u32 %v1445, 7
        %v1447 = vsub.s32 %v1444, %v1446
        %v1448 = vrot.slane %v1440, %v1447
        %v1450 = vunpack.c.l.s4 1934713408
        %v1451 = vunpack.c.0.s8 %v1450
        %v1452 = vlaneseq
        %v1453 = vshrl.u32 %v1452, 7
        %v1454 = vsub.s32 %v1451, %v1453
        %v1455 = vrot.slane %v1441, %v1454
        %v1456 = vcombine.low %v1400, %v1432
        %v1457 = vcombine.high %v1400, %v1432
        %v1458 = vcombine.low %v1407, %v1439
        %v1459 = vcombine.high %v1407, %v1439
        %v1460 = vcombine.low %v1416, %v1448
        %v1461 = vcombine.high %v1416, %v1448
        %v1462 = vcombine.low %v1423, %v1455
        %v1463 = vcombine.high %v1423, %v1455
        %1465 = vrot.lane.b32.xlu0 %v1321, 4
        %v1466 = vpop.permute.xlu0 %1465
        %1469 = vrot.lane.b32.xlu0 %v1322, 8
        %v1470 = vpop.permute.xlu0 %1469
        %1473 = vrot.lane.b32.xlu0 %v1323, 12
        %v1474 = vpop.permute.xlu0 %1473
        %1477 = vrot.lane.b32.xlu0 %v1324, 16
        %v1478 = vpop.permute.xlu0 %1477
        %1481 = vrot.lane.b32.xlu0 %v1325, 20
        %v1482 = vpop.permute.xlu0 %1481
        %1485 = vrot.lane.b32.xlu0 %v1326, 24
        %v1486 = vpop.permute.xlu0 %1485
        %1489 = vrot.lane.b32.xlu0 %v1327, 28
        %v1490 = vpop.permute.xlu0 %1489
        %1493 = vrot.lane.b32.xlu0 %v1456, 32
        %v1494 = vpop.permute.xlu0 %1493
        %1497 = vrot.lane.b32.xlu0 %v1457, 36
        %v1498 = vpop.permute.xlu0 %1497
        %1501 = vrot.lane.b32.xlu0 %v1458, 40
        %v1502 = vpop.permute.xlu0 %1501
        %1505 = vrot.lane.b32.xlu0 %v1459, 44
        %v1506 = vpop.permute.xlu0 %1505
        %1509 = vrot.lane.b32.xlu0 %v1460, 48
        %v1510 = vpop.permute.xlu0 %1509
        %1513 = vrot.lane.b32.xlu0 %v1461, 52
        %v1514 = vpop.permute.xlu0 %1513
        %1517 = vrot.lane.b32.xlu0 %v1462, 56
        %v1518 = vpop.permute.xlu0 %1517
        %1521 = vrot.lane.b32.xlu0 %v1463, 60
        %v1522 = vpop.permute.xlu0 %1521
        %vm1524 = vcmask 31744
        %v1525 = vsel %vm1524, %v1320, %v1466
        %vm1526 = vcmask 64512
        %v1527 = vsel %vm1526, %v1525, %v1470
        %vm1528 = vcmask 97280
        %v1529 = vsel %vm1528, %v1527, %v1474
        %vm1530 = vcmask 130048
        %v1531 = vsel %vm1530, %v1529, %v1478
        %vm1532 = vcmask 162816
        %v1533 = vsel %vm1532, %v1531, %v1482
        %vm1534 = vcmask 195584
        %v1535 = vsel %vm1534, %v1533, %v1486
        %vm1536 = vcmask 228352
        %v1537 = vsel %vm1536, %v1535, %v1490
        %vm1538 = vcmask 261120
        %v1539 = vsel %vm1538, %v1537, %v1494
        %vm1540 = vcmask 293888
        %v1541 = vsel %vm1540, %v1539, %v1498
        %vm1542 = vcmask 326656
        %v1543 = vsel %vm1542, %v1541, %v1502
        %vm1544 = vcmask 359424
        %v1545 = vsel %vm1544, %v1543, %v1506
        %vm1546 = vcmask 392192
        %v1547 = vsel %vm1546, %v1545, %v1510
        %vm1548 = vcmask 424960
        %v1549 = vsel %vm1548, %v1547, %v1514
        %vm1550 = vcmask 457728
        %v1551 = vsel %vm1550, %v1549, %v1518
        %vm1552 = vcmask 490496
        %v1553 = vsel %vm1552, %v1551, %v1522
        %vm1554 = vcmask 523264
        %1555 = vst.msk [vmem:[%s131] sm:$0xff] %vm1554, %v1553
        %s1556 = sand.u32 %s65, 1
        %s1557 = scalar_lea.sflag [#allocation3], %s1556
        %s1558 = sand.u32 %s65, 1
        %s1559 = smul.addr %s1558, 8
        %s1560 = scalar_lea.vmem [#allocation2], %s1559
        // Predicated region
        $region25: #{tpu_custom_call.1} parent=23 // pred_check
          %p1561 = pneg %p75
        $region26: #{tpu_custom_call.1} parent=23 // pred_check_branch
          %1563 = sbr.rel (%p1561) target = $region28
        $region27: #{tpu_custom_call.1} parent=23 // pred_region
          %s1565 = ssub.s32 128, 128
          %1566 = vsyncadd %s1557, %s1565
          %s1567 = sadd.s32 %s20, %s19
          %s1568 = smul.addr %s1567, 128
          %s1569 = scalar_lea.hbm %s1, %s1568
          %s1571 = sshll.u32 %s1560, 4
          %s1572 = int_to_ptr.vmem [resolvable:$true] %s1571
          %1574 = dma.vmem_to_hbm [thread:$0]  %s1572, 128, %s1569, %s1557
        $region28: #{tpu_custom_call.1} parent=23 // pred_fallthru
          _
      $region24: #{tpu_custom_call.1} parent=5 // pred_fallthru
        _
      %p1575 = scmp.le.s32.totalorder 2, %s10
      // Predicated region
      $region29: #{tpu_custom_call.1} parent=5 // pred_check
        %p1576 = pneg %p1575
      $region30: #{tpu_custom_call.1} parent=5 // pred_check_branch
        %1578 = sbr.rel (%p1576) target = $region32
      $region31: #{tpu_custom_call.1} parent=5 // pred_region
        %s1579 = ssub.s32 %s10, 2
        // Predicated region
        $region33: #{tpu_custom_call.1} parent=31 // pred_check
          %p1580 = pneg %p81
        $region34: #{tpu_custom_call.1} parent=31 // pred_check_branch
          %1582 = sbr.rel (%p1580) target = $region36
        $region35: #{tpu_custom_call.1} parent=31 // pred_region
          %s1583 = sand.u32 %s66, 1
          %s1584 = scalar_lea.sflag [#allocation3], %s1583
          %s1585 = sand.u32 %s66, 1
          %s1586 = smul.addr %s1585, 8
          %s1587 = scalar_lea.vmem [#allocation2], %s1586
          %1588 = dma.done %s1584, 128
        $region36: #{tpu_custom_call.1} parent=31 // pred_fallthru
          _
      $region32: #{tpu_custom_call.1} parent=5 // pred_fallthru
        _
    $region6: #{tpu_custom_call.1} parent=1 // loop_footer
      %s14 = sadd.s32 1, %s10
    $region7: #{tpu_custom_call.1} parent=1 // loop_footer_branch
      %9 = sbr.rel target = $region3
    $region8: #{tpu_custom_call.1} parent=1 // loop_exit
      _
    %1589 = vsyncpa [#allocation3], 1
    %s1590 = scalar_lea.sflag [#allocation3], 1
    %1591 = vsyncpa %s1590, 1

</llo_original>
